<compile_context>
chip_gen: v7x
topology: tpu7x:2x2x1
jax: 0.10.0
libtpu: 0.0.40
codegen_flags: <defaults>
</compile_context>

<pallas_src>
import jax
import jax.numpy as jnp
from jax import lax
from jax.experimental import pallas as pl
from jax.experimental.pallas import tpu as pltpu


def _round_up(x, m):
    return ((x + m - 1) // m) * m


def _mlm_head_kernel(x_ref, w_ref, b_ref, o_ref):
    # x_ref: (tm|M, H)  token tile (or full resident x)
    # w_ref: (tn, H)    vocab tile of the tied embedding matrix (nn.Linear layout)
    # b_ref: (1, tn)    f32 bias tile
    # o_ref: (tm|M, tn) logits tile
    acc = lax.dot_general(
        x_ref[...], w_ref[...],
        dimension_numbers=(((1,), (1,)), ((), ())),   # x @ W.T, fused on the MXU
        preferred_element_type=jnp.float32)
    o_ref[...] = (acc + b_ref[...]).astype(o_ref.dtype)


def mlm_head(x, weight, bias, *, tm=512, tn=1024, compute_dtype=None,
             out_dtype=None, x_resident=None):
    """y = x @ weight.T + bias  (PyTorch nn.Linear / MLM-head semantics).

    x:      (batch, seq, hidden)
    weight: (vocab, hidden)   tied word-embedding matrix (NOT pre-transposed).
            For the bf16 path, pass it already cast to bf16 so no per-call copy
            of the full weight is made.
    bias:   (vocab,)
    compute_dtype: optional MXU input dtype (e.g. jnp.bfloat16); accumulation
            is always f32.
    out_dtype: logits dtype.  Defaults to compute_dtype when given (halves the
            M*V output stream), else x.dtype.
    x_resident: force (True/False) the resident-x 1-D-grid layout; default auto.
    returns (batch, seq, vocab)
    """
    B, S, H = x.shape
    V, H2 = weight.shape
    assert H == H2, (H, H2)
    if out_dtype is None:
        out_dtype = compute_dtype if compute_dtype is not None else x.dtype

    M = B * S
    x2 = x.reshape(M, H)
    w = weight
    b2 = bias.astype(jnp.float32).reshape(1, V)   # bias kept/added in f32 (tiny)

    if compute_dtype is not None:
        x2 = x2.astype(compute_dtype)             # x is small; cheap cast
        if w.dtype != compute_dtype:
            # NOTE: for a BERT-size vocab this materializes an extra copy of the
            # full weight in HBM every call — pre-cast the weight once at init
            # so this branch is never taken in production.
            w = w.astype(compute_dtype)

    x_bytes = jnp.dtype(x2.dtype).itemsize
    w_bytes = jnp.dtype(w.dtype).itemsize
    o_bytes = jnp.dtype(out_dtype).itemsize
    b_bytes = 4

    # Lane-dense vocab tile; the ragged last tile (V not a multiple of tn) is
    # handled by Pallas partial-block masking on store.
    tn_eff = min(tn, _round_up(V, 128))
    n_vocab_tiles = pl.cdiv(V, tn_eff)
    M8 = _round_up(M, 8)

    # Generation-aware VMEM budget (v5e/v6e: 128 MiB, v7x: 64 MiB physical).
    try:
        vmem_cap = int(0.75 * pltpu.get_tpu_info().vmem_capacity_bytes)
    except Exception:  # interpret mode / no hardware info available
        vmem_cap = 48 << 20

    # Resident-x plan footprint: x kept in VMEM, W + logits double-buffered.
    need_resident = (2 * M8 * H * x_bytes
                     + 2 * tn_eff * H * w_bytes
                     + 2 * M8 * tn_eff * o_bytes
                     + 2 * _round_up(tn_eff, 128) * b_bytes)
    if x_resident is None:
        x_resident = need_resident + (4 << 20) <= vmem_cap

    if x_resident:
        # 1-D grid over vocab tiles; x is DMA'd once and stays resident
        # (its block index never changes), W is continuously double-buffered.
        grid = (n_vocab_tiles,)
        in_specs = [
            pl.BlockSpec((M, H), lambda j: (0, 0)),       # x: resident
            pl.BlockSpec((tn_eff, H), lambda j: (j, 0)),  # W (V,H): stream vocab
            pl.BlockSpec((1, tn_eff), lambda j: (0, j)),  # bias
        ]
        out_specs = pl.BlockSpec((M, tn_eff), lambda j: (0, j))
        dim_sem = ("parallel",)
        vmem_need = need_resident
        x_streams = 1
        m_work = M
    else:
        # Fallback for very large M: 2-D grid, vocab outermost so each W tile is
        # fetched once and the (smaller) x tiles are re-streamed.
        tm_eff = min(tm, M8)
        grid = (n_vocab_tiles, pl.cdiv(M, tm_eff))
        in_specs = [
            pl.BlockSpec((tm_eff, H), lambda j, i: (i, 0)),
            pl.BlockSpec((tn_eff, H), lambda j, i: (j, 0)),
            pl.BlockSpec((1, tn_eff), lambda j, i: (0, j)),
        ]
        out_specs = pl.BlockSpec((tm_eff, tn_eff), lambda j, i: (i, j))
        dim_sem = ("parallel", "parallel")
        vmem_need = 2 * (tm_eff * H * x_bytes + tn_eff * H * w_bytes
                         + tm_eff * tn_eff * o_bytes
                         + _round_up(tn_eff, 128) * b_bytes)
        x_streams = n_vocab_tiles
        m_work = grid[1] * tm_eff

    vmem_limit = int(min(max(vmem_need + (8 << 20), 32 << 20), vmem_cap))

    cost = pl.CostEstimate(
        flops=2 * m_work * H * (n_vocab_tiles * tn_eff),
        transcendentals=0,
        bytes_accessed=(x_streams * M * H * x_bytes + V * H * w_bytes
                        + M * V * o_bytes + V * b_bytes),
    )

    out = pl.pallas_call(
        _mlm_head_kernel,
        out_shape=jax.ShapeDtypeStruct((M, V), out_dtype),
        grid_spec=pltpu.PrefetchScalarGridSpec(
            num_scalar_prefetch=0,
            grid=grid,
            in_specs=in_specs,
            out_specs=out_specs,
        ),
        compiler_params=pltpu.CompilerParams(
            dimension_semantics=dim_sem,
            vmem_limit_bytes=vmem_limit,
        ),
        cost_estimate=cost,
    )(x2, w, b2)

    return out.reshape(B, S, V)


if __name__ == "__main__":
    # Small shapes consistent with the module: hidden=32, vocab_size=512,
    # batch=2, seq=8.
    batch, seq, hidden, vocab = 2, 8, 32, 512

    key = jax.random.PRNGKey(0)
    kx, kw, kb = jax.random.split(key, 3)

    x = jax.random.normal(kx, (batch, seq, hidden), dtype=jnp.float32)
    # Deterministic synthetic "word embedding" weight (vocab, hidden) and bias.
    weight = jax.random.normal(kw, (vocab, hidden), dtype=jnp.float32) * 0.02
    bias = jax.random.normal(kb, (vocab,), dtype=jnp.float32) * 0.01

    y_ref = x @ weight.T + bias

    # 1) f32 path (resident-x 1-D grid), reference check vs plain JAX.
    y = jax.block_until_ready(mlm_head(x, weight, bias))
    assert y.shape == (batch, seq, vocab)
    assert jnp.allclose(y, y_ref, atol=1e-5, rtol=1e-5), "mismatch vs reference (f32)"

    # 2) Ragged vocab (not a multiple of 128) — sliced WITHIN the vocab this time.
    v_odd = 500
    w_odd = weight[:v_odd]
    b_odd = bias[:v_odd]
    y_odd = jax.block_until_ready(mlm_head(x, w_odd, b_odd))
    assert y_odd.shape == (batch, seq, v_odd)
    assert jnp.allclose(y_odd, x @ w_odd.T + b_odd, atol=1e-5, rtol=1e-5), \
        "mismatch vs reference (ragged vocab)"

    # 3) bf16 MXU path: weight pre-cast ONCE outside the forward path (no
    #    per-call weight copy), bf16 logits, f32 accumulation.
    w_bf16 = weight.astype(jnp.bfloat16)
    y_bf16 = jax.block_until_ready(
        mlm_head(x, w_bf16, bias, compute_dtype=jnp.bfloat16))
    assert y_bf16.dtype == jnp.bfloat16
    assert jnp.allclose(y_bf16.astype(jnp.float32), y_ref, atol=5e-2, rtol=5e-2), \
        "mismatch vs reference (bf16 compute)"

    # 4) Explicitly exercise the 2-D token-tiled fallback path.
    y_2d = jax.block_until_ready(
        mlm_head(x, weight, bias, x_resident=False, tm=8, tn=256))
    assert jnp.allclose(y_2d, y_ref, atol=1e-5, rtol=1e-5), \
        "mismatch vs reference (2-D fallback)"

    print("KERNEL_OK")
</pallas_src>

<mosaic_0001>
module attributes {stable_mosaic.version = 11 : i64} {
  func.func @_mlm_head_kernel(%arg0: i32, %arg1: memref<16x32xf32, #tpu.memory_space<vmem>>, %arg2: memref<512x32xf32, #tpu.memory_space<vmem>>, %arg3: memref<1x512xf32, #tpu.memory_space<vmem>>, %arg4: memref<16x512xf32, #tpu.memory_space<vmem>>) attributes {dimension_semantics = [#tpu.dimension_semantics<parallel>], iteration_bounds = array<i64: 1>, scalar_prefetch = 0 : i64, scratch_operands = 0 : i64, tpu.core_type = #tpu.core_type<tc>, window_params = [{pipeline_mode = #tpu.pipeline_mode<synchronous>, transform_indices = @transform_0, window_bounds = array<i64: 16, 32>}, {transform_indices = @transform_1, window_bounds = array<i64: 512, 32>}, {transform_indices = @transform_2, window_bounds = array<i64: 1, 512>}, {transform_indices = @transform_3, window_bounds = array<i64: 16, 512>}]} {
    %c0 = arith.constant 0 : index
    %c0_0 = arith.constant 0 : index
    %0 = vector.load %arg1[%c0, %c0_0] : memref<16x32xf32, #tpu.memory_space<vmem>>, vector<16x32xf32>
    %c0_1 = arith.constant 0 : index
    %c0_2 = arith.constant 0 : index
    %1 = vector.load %arg2[%c0_1, %c0_2] : memref<512x32xf32, #tpu.memory_space<vmem>>, vector<512x32xf32>
    %cst = arith.constant dense<0.000000e+00> : vector<16x512xf32>
    %2 = tpu.matmul %0, %1, %cst {dimension_numbers = #tpu.dot_dimension_numbers<[1], [1], [0], [0], [0, 0, 1, 0], [], []>} : vector<16x32xf32>, vector<512x32xf32>, vector<16x512xf32> -> vector<16x512xf32>
    %c0_3 = arith.constant 0 : index
    %c0_4 = arith.constant 0 : index
    %3 = vector.load %arg3[%c0_3, %c0_4] : memref<1x512xf32, #tpu.memory_space<vmem>>, vector<1x512xf32>
    %4 = vector.broadcast %3 : vector<1x512xf32> to vector<16x512xf32>
    %5 = arith.addf %2, %4 : vector<16x512xf32>
    %c0_5 = arith.constant 0 : index
    %c0_6 = arith.constant 0 : index
    %6 = vector.load %arg4[%c0_5, %c0_6] : memref<16x512xf32, #tpu.memory_space<vmem>>, vector<16x512xf32>
    tpu.vector_store %arg4[%c0_5, %c0_6], %5 {strides = array<i32>} : memref<16x512xf32, #tpu.memory_space<vmem>>, vector<16x512xf32>,
    return
  }
  func.func @transform_0(%arg0: i32) -> (i32, i32) {
    %c0_i32 = arith.constant 0 : i32
    %c0_i32_0 = arith.constant 0 : i32
    %c0_i32_1 = arith.constant 0 : i32
    return %c0_i32, %c0_i32_0 : i32, i32
  }
  func.func @transform_1(%arg0: i32) -> (i32, i32) {
    %c0_i32 = arith.constant 0 : i32
    %c0_i32_0 = arith.constant 0 : i32
    return %arg0, %c0_i32 : i32, i32
  }
  func.func @transform_2(%arg0: i32) -> (i32, i32) {
    %c0_i32 = arith.constant 0 : i32
    %c0_i32_0 = arith.constant 0 : i32
    return %c0_i32, %arg0 : i32, i32
  }
  func.func @transform_3(%arg0: i32) -> (i32, i32) {
    %c0_i32 = arith.constant 0 : i32
    %c0_i32_0 = arith.constant 0 : i32
    return %c0_i32, %arg0 : i32, i32
  }
}

</mosaic_0001>

<llo_original>
// kernel: tpu_custom_call.1
$region0: #{tpu_custom_call.1}
  #allocation0 [shape = 'u32[]', space=smem, size = 0x4, offset = 0x4, fixed_abs, tag = 'smem constant byte address 0x4 - core index']
  #allocation1 [shape = 'u32[144,128]{1,0:T(1,128)}', space=vmem, size = 0x12000, scoped, tag = 'internal scratch']
  %s0 = inlined_call_operand.vmem [shape: f32[16,32], index: 0, kind: input, shape index: {}]
  %s1 = inlined_call_operand.vmem [shape: f32[512,32], index: 1, kind: input, shape index: {}]
  %s2 = inlined_call_operand.vmem [shape: f32[1,512], index: 2, kind: input, shape index: {}]
  %s3 = inlined_call_operand.hbm [shape: f32[16,512], index: 3, kind: output, shape index: {}]
  %s4 = sld [smem:[#allocation0]]
  $region22: #{tpu_custom_call.1} parent=0
    _
  %s6 = ssub.s32 1, %s4
  %s7 = scalar_select 0, %s6, %s4
  $region1: #{tpu_custom_call.1} parent=0
    #allocation2 [shape = 'u8[32768]{0}', space=vmem, size = 0x8000, scoped, tag = 'output window, operand 0, single buffered']
    #allocation3 [shape = 's32[1]{0}', space=sflag, size = 0x4, scoped, tag = 'scoped memory for tpu_custom_call.1']
    %8 = vsyncpa [#allocation3], 0
    // Predicated region
    $region2: #{tpu_custom_call.1} parent=1 // pred_check
      _
    $region3: #{tpu_custom_call.1} parent=1 // pred_check_branch
      %10 = sbr.rel (0) target = $region5
    $region4: #{tpu_custom_call.1} parent=1 // pred_region
      _
    $region5: #{tpu_custom_call.1} parent=1 // pred_fallthru
      _
    // Predicated region
    $region6: #{tpu_custom_call.1} parent=1 // pred_check
      _
    $region7: #{tpu_custom_call.1} parent=1 // pred_check_branch
      %12 = sbr.rel (0) target = $region9
    $region8: #{tpu_custom_call.1} parent=1 // pred_region
      _
    $region9: #{tpu_custom_call.1} parent=1 // pred_fallthru
      _
    // Predicated region
    $region10: #{tpu_custom_call.1} parent=1 // pred_check
      _
    $region11: #{tpu_custom_call.1} parent=1 // pred_check_branch
      %14 = sbr.rel (0) target = $region13
    $region12: #{tpu_custom_call.1} parent=1 // pred_region
      _
    $region13: #{tpu_custom_call.1} parent=1 // pred_fallthru
      _
    %v15 = vld [vmem:[%s0] sm:$0xff]
    %v16 = vld [vmem:[%s0 + $0x8] sm:$0xff]
    %v17 = vld [vmem:[%s1] sm:$0xff]
    %v18 = vld [vmem:[%s1 + $0x8] sm:$0xff]
    %v19 = vld [vmem:[%s1 + $0x10] sm:$0xff]
    %v20 = vld [vmem:[%s1 + $0x18] sm:$0xff]
    %v21 = vld [vmem:[%s1 + $0x20] sm:$0xff]
    %v22 = vld [vmem:[%s1 + $0x28] sm:$0xff]
    %v23 = vld [vmem:[%s1 + $0x30] sm:$0xff]
    %v24 = vld [vmem:[%s1 + $0x38] sm:$0xff]
    %v25 = vld [vmem:[%s1 + $0x40] sm:$0xff]
    %v26 = vld [vmem:[%s1 + $0x48] sm:$0xff]
    %v27 = vld [vmem:[%s1 + $0x50] sm:$0xff]
    %v28 = vld [vmem:[%s1 + $0x58] sm:$0xff]
    %v29 = vld [vmem:[%s1 + $0x60] sm:$0xff]
    %v30 = vld [vmem:[%s1 + $0x68] sm:$0xff]
    %v31 = vld [vmem:[%s1 + $0x70] sm:$0xff]
    %v32 = vld [vmem:[%s1 + $0x78] sm:$0xff]
    %v33 = vld [vmem:[%s1 + $0x80] sm:$0xff]
    %v34 = vld [vmem:[%s1 + $0x88] sm:$0xff]
    %v35 = vld [vmem:[%s1 + $0x90] sm:$0xff]
    %v36 = vld [vmem:[%s1 + $0x98] sm:$0xff]
    %v37 = vld [vmem:[%s1 + $0xa0] sm:$0xff]
    %v38 = vld [vmem:[%s1 + $0xa8] sm:$0xff]
    %v39 = vld [vmem:[%s1 + $0xb0] sm:$0xff]
    %v40 = vld [vmem:[%s1 + $0xb8] sm:$0xff]
    %v41 = vld [vmem:[%s1 + $0xc0] sm:$0xff]
    %v42 = vld [vmem:[%s1 + $0xc8] sm:$0xff]
    %v43 = vld [vmem:[%s1 + $0xd0] sm:$0xff]
    %v44 = vld [vmem:[%s1 + $0xd8] sm:$0xff]
    %v45 = vld [vmem:[%s1 + $0xe0] sm:$0xff]
    %v46 = vld [vmem:[%s1 + $0xe8] sm:$0xff]
    %v47 = vld [vmem:[%s1 + $0xf0] sm:$0xff]
    %v48 = vld [vmem:[%s1 + $0xf8] sm:$0xff]
    %v49 = vld [vmem:[%s1 + $0x100] sm:$0xff]
    %v50 = vld [vmem:[%s1 + $0x108] sm:$0xff]
    %v51 = vld [vmem:[%s1 + $0x110] sm:$0xff]
    %v52 = vld [vmem:[%s1 + $0x118] sm:$0xff]
    %v53 = vld [vmem:[%s1 + $0x120] sm:$0xff]
    %v54 = vld [vmem:[%s1 + $0x128] sm:$0xff]
    %v55 = vld [vmem:[%s1 + $0x130] sm:$0xff]
    %v56 = vld [vmem:[%s1 + $0x138] sm:$0xff]
    %v57 = vld [vmem:[%s1 + $0x140] sm:$0xff]
    %v58 = vld [vmem:[%s1 + $0x148] sm:$0xff]
    %v59 = vld [vmem:[%s1 + $0x150] sm:$0xff]
    %v60 = vld [vmem:[%s1 + $0x158] sm:$0xff]
    %v61 = vld [vmem:[%s1 + $0x160] sm:$0xff]
    %v62 = vld [vmem:[%s1 + $0x168] sm:$0xff]
    %v63 = vld [vmem:[%s1 + $0x170] sm:$0xff]
    %v64 = vld [vmem:[%s1 + $0x178] sm:$0xff]
    %v65 = vld [vmem:[%s1 + $0x180] sm:$0xff]
    %v66 = vld [vmem:[%s1 + $0x188] sm:$0xff]
    %v67 = vld [vmem:[%s1 + $0x190] sm:$0xff]
    %v68 = vld [vmem:[%s1 + $0x198] sm:$0xff]
    %v69 = vld [vmem:[%s1 + $0x1a0] sm:$0xff]
    %v70 = vld [vmem:[%s1 + $0x1a8] sm:$0xff]
    %v71 = vld [vmem:[%s1 + $0x1b0] sm:$0xff]
    %v72 = vld [vmem:[%s1 + $0x1b8] sm:$0xff]
    %v73 = vld [vmem:[%s1 + $0x1c0] sm:$0xff]
    %v74 = vld [vmem:[%s1 + $0x1c8] sm:$0xff]
    %v75 = vld [vmem:[%s1 + $0x1d0] sm:$0xff]
    %v76 = vld [vmem:[%s1 + $0x1d8] sm:$0xff]
    %v77 = vld [vmem:[%s1 + $0x1e0] sm:$0xff]
    %v78 = vld [vmem:[%s1 + $0x1e8] sm:$0xff]
    %v79 = vld [vmem:[%s1 + $0x1f0] sm:$0xff]
    %v80 = vld [vmem:[%s1 + $0x1f8] sm:$0xff]
    %v81 = vld [vmem:[%s2] sm:$0xf]
    %v83 = vlaneseq
    %v84 = vshrl.u32 %v83, 7
    %v85 = vsub.s32 0, %v84
    %v86 = vrot.slane %v81, %v85
    %v87 = vlaneseq
    %v88 = vshrl.u32 %v87, 7
    %v89 = vsub.s32 1, %v88
    %v90 = vrot.slane %v81, %v89
    %v91 = vlaneseq
    %v92 = vshrl.u32 %v91, 7
    %v93 = vsub.s32 2, %v92
    %v94 = vrot.slane %v81, %v93
    %v95 = vlaneseq
    %v96 = vshrl.u32 %v95, 7
    %v97 = vsub.s32 3, %v96
    %v98 = vrot.slane %v81, %v97
    %vm103 = vcmask 261120
    %v105 = vsel %vm103, %v15, 0
    %v108 = vsel %vm103, %v16, 0
    %v111 = vsel %vm103, %v17, 0
    %v114 = vsel %vm103, %v18, 0
    %v117 = vsel %vm103, %v19, 0
    %v120 = vsel %vm103, %v20, 0
    %v123 = vsel %vm103, %v21, 0
    %v126 = vsel %vm103, %v22, 0
    %v129 = vsel %vm103, %v23, 0
    %v132 = vsel %vm103, %v24, 0
    %v135 = vsel %vm103, %v25, 0
    %v138 = vsel %vm103, %v26, 0
    %v141 = vsel %vm103, %v27, 0
    %v144 = vsel %vm103, %v28, 0
    %v147 = vsel %vm103, %v29, 0
    %v150 = vsel %vm103, %v30, 0
    %v153 = vsel %vm103, %v31, 0
    %v156 = vsel %vm103, %v32, 0
    %v159 = vsel %vm103, %v33, 0
    %v162 = vsel %vm103, %v34, 0
    %v165 = vsel %vm103, %v35, 0
    %v168 = vsel %vm103, %v36, 0
    %v171 = vsel %vm103, %v37, 0
    %v174 = vsel %vm103, %v38, 0
    %v177 = vsel %vm103, %v39, 0
    %v180 = vsel %vm103, %v40, 0
    %v183 = vsel %vm103, %v41, 0
    %v186 = vsel %vm103, %v42, 0
    %v189 = vsel %vm103, %v43, 0
    %v192 = vsel %vm103, %v44, 0
    %v195 = vsel %vm103, %v45, 0
    %v198 = vsel %vm103, %v46, 0
    %v201 = vsel %vm103, %v47, 0
    %v204 = vsel %vm103, %v48, 0
    %v207 = vsel %vm103, %v49, 0
    %v210 = vsel %vm103, %v50, 0
    %v213 = vsel %vm103, %v51, 0
    %v216 = vsel %vm103, %v52, 0
    %v219 = vsel %vm103, %v53, 0
    %v222 = vsel %vm103, %v54, 0
    %v225 = vsel %vm103, %v55, 0
    %v228 = vsel %vm103, %v56, 0
    %v231 = vsel %vm103, %v57, 0
    %v234 = vsel %vm103, %v58, 0
    %v237 = vsel %vm103, %v59, 0
    %v240 = vsel %vm103, %v60, 0
    %v243 = vsel %vm103, %v61, 0
    %v246 = vsel %vm103, %v62, 0
    %v249 = vsel %vm103, %v63, 0
    %v252 = vsel %vm103, %v64, 0
    %v255 = vsel %vm103, %v65, 0
    %v258 = vsel %vm103, %v66, 0
    %v261 = vsel %vm103, %v67, 0
    %v264 = vsel %vm103, %v68, 0
    %v267 = vsel %vm103, %v69, 0
    %v270 = vsel %vm103, %v70, 0
    %v273 = vsel %vm103, %v71, 0
    %v276 = vsel %vm103, %v72, 0
    %v279 = vsel %vm103, %v73, 0
    %v282 = vsel %vm103, %v74, 0
    %v285 = vsel %vm103, %v75, 0
    %v288 = vsel %vm103, %v76, 0
    %v291 = vsel %vm103, %v77, 0
    %v294 = vsel %vm103, %v78, 0
    %v297 = vsel %vm103, %v79, 0
    %v300 = vsel %vm103, %v80, 0
    %302 = vmatprep.subr.mxu0 0.0
    %303 = vmatpush1.xpose.msra.mxu0 %v111
    %304 = vmatprep.subr.mxu0 0.0
    %305 = vmatpush1.xpose.msra.mxu0 %v114
    %306 = vmatprep.subr.mxu0 0.0
    %307 = vmatpush1.xpose.msra.mxu0 %v117
    %308 = vmatprep.subr.mxu0 0.0
    %309 = vmatpush1.xpose.msra.mxu0 %v120
    %310 = vmatprep.subr.mxu0 0.0
    %311 = vmatpush1.xpose.msra.mxu0 %v123
    %312 = vmatprep.subr.mxu0 0.0
    %313 = vmatpush1.xpose.msra.mxu0 %v126
    %314 = vmatprep.subr.mxu0 0.0
    %315 = vmatpush1.xpose.msra.mxu0 %v129
    %316 = vmatprep.subr.mxu0 0.0
    %317 = vmatpush1.xpose.msra.mxu0 %v132
    %318 = vmatprep.subr.mxu0 0.0
    %319 = vmatpush1.xpose.msra.mxu0 %v135
    %320 = vmatprep.subr.mxu0 0.0
    %321 = vmatpush1.xpose.msra.mxu0 %v138
    %322 = vmatprep.subr.mxu0 0.0
    %323 = vmatpush1.xpose.msra.mxu0 %v141
    %324 = vmatprep.subr.mxu0 0.0
    %325 = vmatpush1.xpose.msra.mxu0 %v144
    %326 = vmatprep.subr.mxu0 0.0
    %327 = vmatpush1.xpose.msra.mxu0 %v147
    %328 = vmatprep.subr.mxu0 0.0
    %329 = vmatpush1.xpose.msra.mxu0 %v150
    %330 = vmatprep.subr.mxu0 0.0
    %331 = vmatpush1.xpose.msra.mxu0 %v153
    %332 = vmatprep.subr.mxu0 0.0
    %333 = vmatpush1.xpose.msra.mxu0 %v156
    %334 = vmatprep.subr.mxu0 0.0
    %335 = vmatpush1.xpose.msra.mxu0 %v159
    %336 = vmatprep.subr.mxu0 0.0
    %337 = vmatpush1.xpose.msra.mxu0 %v162
    %338 = vmatprep.subr.mxu0 0.0
    %339 = vmatpush1.xpose.msra.mxu0 %v165
    %340 = vmatprep.subr.mxu0 0.0
    %341 = vmatpush1.xpose.msra.mxu0 %v168
    %342 = vmatprep.subr.mxu0 0.0
    %343 = vmatpush1.xpose.msra.mxu0 %v171
    %344 = vmatprep.subr.mxu0 0.0
    %345 = vmatpush1.xpose.msra.mxu0 %v174
    %346 = vmatprep.subr.mxu0 0.0
    %347 = vmatpush1.xpose.msra.mxu0 %v177
    %348 = vmatprep.subr.mxu0 0.0
    %349 = vmatpush1.xpose.msra.mxu0 %v180
    %350 = vmatprep.subr.mxu0 0.0
    %351 = vmatpush1.xpose.msra.mxu0 %v183
    %352 = vmatprep.subr.mxu0 0.0
    %353 = vmatpush1.xpose.msra.mxu0 %v186
    %354 = vmatprep.subr.mxu0 0.0
    %355 = vmatpush1.xpose.msra.mxu0 %v189
    %356 = vmatprep.subr.mxu0 0.0
    %357 = vmatpush1.xpose.msra.mxu0 %v192
    %358 = vmatprep.subr.mxu0 0.0
    %359 = vmatpush1.xpose.msra.mxu0 %v195
    %360 = vmatprep.subr.mxu0 0.0
    %361 = vmatpush1.xpose.msra.mxu0 %v198
    %362 = vmatprep.subr.mxu0 0.0
    %363 = vmatpush1.xpose.msra.mxu0 %v201
    %364 = vmatprep.subr.mxu0 0.0
    %365 = vmatpush1.xpose.msra.mxu0 %v204
    %366 = vmatprep.mubr.f32.mxu0 0.0
    %367 = vmatmul.mubr.f32.gmra.mrb[0].mxu0 %v105
    %v368 = vpop.f32.mrb[0].mxu0
    %v369 = vadd.f32 %v86, %v368
    %v370 = vpop.f32.mrb[0].mxu0
    %v371 = vadd.f32 %v90, %v370
    %372 = vmatprep.mubr.f32.mxu0 0.0
    %373 = vmatmul.mubr.f32.gmra.mrb[0].mxu0 %v108
    %v374 = vpop.f32.mrb[0].mxu0
    %v375 = vadd.f32 %v86, %v374
    %v376 = vpop.f32.mrb[0].mxu0
    %v377 = vadd.f32 %v90, %v376
    %378 = vdwg.mxu0
    %379 = vmatprep.subr.mxu0 0.0
    %380 = vmatpush1.xpose.msra.mxu0 %v207
    %381 = vmatprep.subr.mxu0 0.0
    %382 = vmatpush1.xpose.msra.mxu0 %v210
    %383 = vmatprep.subr.mxu0 0.0
    %384 = vmatpush1.xpose.msra.mxu0 %v213
    %385 = vmatprep.subr.mxu0 0.0
    %386 = vmatpush1.xpose.msra.mxu0 %v216
    %387 = vmatprep.subr.mxu0 0.0
    %388 = vmatpush1.xpose.msra.mxu0 %v219
    %389 = vmatprep.subr.mxu0 0.0
    %390 = vmatpush1.xpose.msra.mxu0 %v222
    %391 = vmatprep.subr.mxu0 0.0
    %392 = vmatpush1.xpose.msra.mxu0 %v225
    %393 = vmatprep.subr.mxu0 0.0
    %394 = vmatpush1.xpose.msra.mxu0 %v228
    %395 = vmatprep.subr.mxu0 0.0
    %396 = vmatpush1.xpose.msra.mxu0 %v231
    %397 = vmatprep.subr.mxu0 0.0
    %398 = vmatpush1.xpose.msra.mxu0 %v234
    %399 = vmatprep.subr.mxu0 0.0
    %400 = vmatpush1.xpose.msra.mxu0 %v237
    %401 = vmatprep.subr.mxu0 0.0
    %402 = vmatpush1.xpose.msra.mxu0 %v240
    %403 = vmatprep.subr.mxu0 0.0
    %404 = vmatpush1.xpose.msra.mxu0 %v243
    %405 = vmatprep.subr.mxu0 0.0
    %406 = vmatpush1.xpose.msra.mxu0 %v246
    %407 = vmatprep.subr.mxu0 0.0
    %408 = vmatpush1.xpose.msra.mxu0 %v249
    %409 = vmatprep.subr.mxu0 0.0
    %410 = vmatpush1.xpose.msra.mxu0 %v252
    %411 = vmatprep.subr.mxu0 0.0
    %412 = vmatpush1.xpose.msra.mxu0 %v255
    %413 = vmatprep.subr.mxu0 0.0
    %414 = vmatpush1.xpose.msra.mxu0 %v258
    %415 = vmatprep.subr.mxu0 0.0
    %416 = vmatpush1.xpose.msra.mxu0 %v261
    %417 = vmatprep.subr.mxu0 0.0
    %418 = vmatpush1.xpose.msra.mxu0 %v264
    %419 = vmatprep.subr.mxu0 0.0
    %420 = vmatpush1.xpose.msra.mxu0 %v267
    %421 = vmatprep.subr.mxu0 0.0
    %422 = vmatpush1.xpose.msra.mxu0 %v270
    %423 = vmatprep.subr.mxu0 0.0
    %424 = vmatpush1.xpose.msra.mxu0 %v273
    %425 = vmatprep.subr.mxu0 0.0
    %426 = vmatpush1.xpose.msra.mxu0 %v276
    %427 = vmatprep.subr.mxu0 0.0
    %428 = vmatpush1.xpose.msra.mxu0 %v279
    %429 = vmatprep.subr.mxu0 0.0
    %430 = vmatpush1.xpose.msra.mxu0 %v282
    %431 = vmatprep.subr.mxu0 0.0
    %432 = vmatpush1.xpose.msra.mxu0 %v285
    %433 = vmatprep.subr.mxu0 0.0
    %434 = vmatpush1.xpose.msra.mxu0 %v288
    %435 = vmatprep.subr.mxu0 0.0
    %436 = vmatpush1.xpose.msra.mxu0 %v291
    %437 = vmatprep.subr.mxu0 0.0
    %438 = vmatpush1.xpose.msra.mxu0 %v294
    %439 = vmatprep.subr.mxu0 0.0
    %440 = vmatpush1.xpose.msra.mxu0 %v297
    %441 = vmatprep.subr.mxu0 0.0
    %442 = vmatpush1.xpose.msra.mxu0 %v300
    %443 = vmatprep.mubr.f32.mxu0 0.0
    %444 = vmatmul.mubr.f32.gmra.mrb[0].mxu0 %v105
    %v445 = vpop.f32.mrb[0].mxu0
    %v446 = vadd.f32 %v94, %v445
    %v447 = vpop.f32.mrb[0].mxu0
    %v448 = vadd.f32 %v98, %v447
    %449 = vmatprep.mubr.f32.mxu0 0.0
    %450 = vmatmul.mubr.f32.gmra.mrb[0].mxu0 %v108
    %v451 = vpop.f32.mrb[0].mxu0
    %v452 = vadd.f32 %v94, %v451
    %v453 = vpop.f32.mrb[0].mxu0
    %v454 = vadd.f32 %v98, %v453
    %455 = vdwg.mxu0
    %456 = vst [vmem:[#allocation2] sm:$0xff] %v369
    %457 = vst [vmem:[#allocation2 + $0x8] sm:$0xff] %v371
    %458 = vst [vmem:[#allocation2 + $0x10] sm:$0xff] %v446
    %459 = vst [vmem:[#allocation2 + $0x18] sm:$0xff] %v448
    %460 = vst [vmem:[#allocation2 + $0x20] sm:$0xff] %v375
    %461 = vst [vmem:[#allocation2 + $0x28] sm:$0xff] %v377
    %462 = vst [vmem:[#allocation2 + $0x30] sm:$0xff] %v452
    %463 = vst [vmem:[#allocation2 + $0x38] sm:$0xff] %v454
    // Predicated region
    $region14: #{tpu_custom_call.1} parent=1 // pred_check
      _
    $region15: #{tpu_custom_call.1} parent=1 // pred_check_branch
      %465 = sbr.rel (0) target = $region17
    $region16: #{tpu_custom_call.1} parent=1 // pred_region
      %s467 = ssub.s32 1024, 1024
      %468 = vsyncadd [#allocation3], %s467
      %s469 = sshll.u32 [#allocation2], 4
      %s470 = int_to_ptr.vmem [resolvable:$true] %s469
      %475 = dma.vmem_to_hbm [thread:$0]  %s470, 1024, %s3, [#allocation3], 512, 512, 32
    $region17: #{tpu_custom_call.1} parent=1 // pred_fallthru
      _
    // Predicated region
    $region18: #{tpu_custom_call.1} parent=1 // pred_check
      _
    $region19: #{tpu_custom_call.1} parent=1 // pred_check_branch
      %477 = sbr.rel (0) target = $region21
    $region20: #{tpu_custom_call.1} parent=1 // pred_region
      %478 = dma.done [#allocation3], 1024
    $region21: #{tpu_custom_call.1} parent=1 // pred_fallthru
      _
    %479 = vsyncpa [#allocation3], 1

</llo_original>
